<compile_context>
chip_gen: v7x
topology: tpu7x:2x2x1
jax: 0.10.0
libtpu: 0.0.40
codegen_flags: <defaults>
</compile_context>

<pallas_src>
import jax
import jax.numpy as jnp
from jax import lax
from jax.experimental import pallas as pl
from jax.experimental.pallas import tpu as pltpu

LN_EPS = 1e-5  # PyTorch nn.LayerNorm default


def addnorm_kernel(x_ref, y_ref, gamma_ref, beta_ref, o_ref):
    # Load scale/shift once as f32 locals (they live untiled in VMEM).
    g = gamma_ref[...].astype(jnp.float32)          # (1, hidden)
    b = beta_ref[...].astype(jnp.float32)           # (1, hidden)

    # Residual add (dropout == identity in eval mode), f32 accumulation.
    z = x_ref[...].astype(jnp.float32) + y_ref[...].astype(jnp.float32)

    # Single-pass layernorm statistics over the last (hidden) axis, in f32.
    mean = jnp.mean(z, axis=-1, keepdims=True)
    mean_sq = jnp.mean(z * z, axis=-1, keepdims=True)
    var = jnp.maximum(mean_sq - mean * mean, 0.0)   # guard tiny cancellation
    inv = lax.rsqrt(var + LN_EPS)

    o_ref[...] = ((z - mean) * inv * g + b).astype(o_ref.dtype)


def _choose_row_tile(rows, hidden, itemsize, vmem_budget_bytes):
    """Pick a large, sublane-packed row tile that fits the VMEM budget."""
    # Working set: x, y, out blocks, each double-buffered -> 6 blocks resident.
    per_row_bytes = 6 * hidden * itemsize
    tile = max(1, vmem_budget_bytes // per_row_bytes)
    # Sublane packing: f32 -> 8 rows/vreg, bf16 -> 16, int8/fp8 -> 32.
    pack = max(8, 32 // itemsize)
    tile = max(pack, (tile // pack) * pack)
    tile = min(tile, 2048)
    # Never make the tile larger than the (packed-up) problem itself.
    rows_up = ((rows + pack - 1) // pack) * pack
    return min(tile, rows_up), pack


def add_norm(x, y, gamma, beta, *, dropout_rate=0.0, training=False,
             row_tile=None, vmem_budget_bytes=24 << 20):
    """x, y: (..., hidden); gamma, beta: (hidden,). Eval-mode AddNorm."""
    if training and dropout_rate > 0.0:
        # TODO(synk): training-mode dropout mask not implemented in-kernel.
        raise NotImplementedError(
            "Pallas AddNorm implements eval-mode (identity) dropout only.")

    assert x.shape == y.shape
    *lead, hidden = x.shape
    assert gamma.shape == (hidden,) and beta.shape == (hidden,)

    rows = 1
    for d in lead:
        rows *= d

    itemsize = jnp.dtype(x.dtype).itemsize
    if row_tile is None:
        row_tile, pack = _choose_row_tile(rows, hidden, itemsize, vmem_budget_bytes)
    else:
        pack = max(8, 32 // itemsize)
        assert row_tile % pack == 0, f"row_tile must be a multiple of {pack}"

    # Pad rows up to a multiple of row_tile (tail handling for real shapes).
    rows_padded = ((rows + row_tile - 1) // row_tile) * row_tile
    x2 = x.reshape(rows, hidden)
    y2 = y.reshape(rows, hidden)
    if rows_padded != rows:
        pad = rows_padded - rows
        x2 = jnp.pad(x2, ((0, pad), (0, 0)))
        y2 = jnp.pad(y2, ((0, pad), (0, 0)))
    g2 = gamma.reshape(1, hidden)
    b2 = beta.reshape(1, hidden)

    grid = (rows_padded // row_tile,)

    # Scoped VMEM: blocks + headroom. Raises v5e's 16 MiB default, stays well
    # under v7x's 64 MiB physical.
    blocks_bytes = 6 * row_tile * hidden * itemsize + 2 * hidden * 4
    vmem_limit = int(min(max(32 << 20, blocks_bytes + (4 << 20)), 48 << 20))

    out = pl.pallas_call(
        addnorm_kernel,
        out_shape=jax.ShapeDtypeStruct((rows_padded, hidden), x.dtype),
        grid_spec=pltpu.PrefetchScalarGridSpec(
            num_scalar_prefetch=0,
            grid=grid,
            in_specs=[
                pl.BlockSpec((row_tile, hidden), lambda i: (i, 0)),
                pl.BlockSpec((row_tile, hidden), lambda i: (i, 0)),
                # gamma/beta: whole array resident in VMEM, no per-step DMA.
                pl.BlockSpec(memory_space=pltpu.MemorySpace.VMEM),
                pl.BlockSpec(memory_space=pltpu.MemorySpace.VMEM),
            ],
            out_specs=pl.BlockSpec((row_tile, hidden), lambda i: (i, 0)),
        ),
        compiler_params=pltpu.CompilerParams(
            dimension_semantics=("parallel",),
            vmem_limit_bytes=vmem_limit,
        ),
    )(x2, y2, g2, b2)

    if rows_padded != rows:
        out = out[:rows]
    return out.reshape(*lead, hidden)


if __name__ == "__main__":
    batch, seq, hidden = 2, 8, 32
    dropout_p = 0.1  # identity in eval mode

    key = jax.random.PRNGKey(0)
    kx, ky = jax.random.split(key)
    X = jax.random.normal(kx, (batch, seq, hidden), dtype=jnp.float32)
    Y = jax.random.normal(ky, (batch, seq, hidden), dtype=jnp.float32)

    # nn.LayerNorm(hidden) default init: weight=1, bias=0.
    gamma = jnp.ones((hidden,), dtype=jnp.float32)
    beta = jnp.zeros((hidden,), dtype=jnp.float32)

    out = add_norm(X, Y, gamma, beta, dropout_rate=dropout_p, training=False)
    jax.block_until_ready(out)

    # Reference check in plain JAX (two-pass layernorm).
    z = Y + X
    mean = jnp.mean(z, axis=-1, keepdims=True)
    var = jnp.mean((z - mean) ** 2, axis=-1, keepdims=True)
    ref = (z - mean) / jnp.sqrt(var + LN_EPS) * gamma + beta
    assert out.shape == ref.shape
    assert jnp.allclose(out, ref, atol=1e-5, rtol=1e-5), "mismatch vs reference"

    print("KERNEL_OK")
</pallas_src>

<mosaic_0001>
module attributes {stable_mosaic.version = 11 : i64} {
  func.func @addnorm_kernel(%arg0: i32, %arg1: memref<16x32xf32, #tpu.memory_space<vmem>>, %arg2: memref<16x32xf32, #tpu.memory_space<vmem>>, %arg3: memref<1x32xf32, #tpu.memory_space<vmem>>, %arg4: memref<1x32xf32, #tpu.memory_space<vmem>>, %arg5: memref<16x32xf32, #tpu.memory_space<vmem>>) attributes {dimension_semantics = [#tpu.dimension_semantics<parallel>], iteration_bounds = array<i64: 1>, scalar_prefetch = 0 : i64, scratch_operands = 0 : i64, tpu.core_type = #tpu.core_type<tc>, window_params = [{transform_indices = @transform_0, window_bounds = array<i64: 16, 32>}, {transform_indices = @transform_1, window_bounds = array<i64: 16, 32>}, {pipeline_mode = #tpu.pipeline_mode<synchronous>, transform_indices = @transform_2, window_bounds = array<i64: 1, 32>}, {pipeline_mode = #tpu.pipeline_mode<synchronous>, transform_indices = @transform_3, window_bounds = array<i64: 1, 32>}, {transform_indices = @transform_4, window_bounds = array<i64: 16, 32>}]} {
    %c0 = arith.constant 0 : index
    %c0_0 = arith.constant 0 : index
    %0 = vector.load %arg3[%c0, %c0_0] : memref<1x32xf32, #tpu.memory_space<vmem>>, vector<1x32xf32>
    %c0_1 = arith.constant 0 : index
    %c0_2 = arith.constant 0 : index
    %1 = vector.load %arg4[%c0_1, %c0_2] : memref<1x32xf32, #tpu.memory_space<vmem>>, vector<1x32xf32>
    %c0_3 = arith.constant 0 : index
    %c0_4 = arith.constant 0 : index
    %2 = vector.load %arg1[%c0_3, %c0_4] : memref<16x32xf32, #tpu.memory_space<vmem>>, vector<16x32xf32>
    %c0_5 = arith.constant 0 : index
    %c0_6 = arith.constant 0 : index
    %3 = vector.load %arg2[%c0_5, %c0_6] : memref<16x32xf32, #tpu.memory_space<vmem>>, vector<16x32xf32>
    %4 = arith.addf %2, %3 : vector<16x32xf32>
    %cst = arith.constant dense<0.000000e+00> : vector<16xf32>
    %5 = vector.multi_reduction <add>, %4, %cst [1] : vector<16x32xf32> to vector<16xf32>
    %6 = vector.shape_cast %5 : vector<16xf32> to vector<16x1xf32>
    %cst_7 = arith.constant 3.200000e+01 : f32
    %7 = vector.broadcast %cst_7 : f32 to vector<16x1xf32>
    %8 = arith.divf %6, %7 : vector<16x1xf32>
    %9 = arith.mulf %4, %4 : vector<16x32xf32>
    %cst_8 = arith.constant dense<0.000000e+00> : vector<16xf32>
    %10 = vector.multi_reduction <add>, %9, %cst_8 [1] : vector<16x32xf32> to vector<16xf32>
    %11 = vector.shape_cast %10 : vector<16xf32> to vector<16x1xf32>
    %cst_9 = arith.constant 3.200000e+01 : f32
    %12 = vector.broadcast %cst_9 : f32 to vector<16x1xf32>
    %13 = arith.divf %11, %12 : vector<16x1xf32>
    %14 = arith.mulf %8, %8 : vector<16x1xf32>
    %15 = arith.subf %13, %14 : vector<16x1xf32>
    %cst_10 = arith.constant 0.000000e+00 : f32
    %16 = vector.broadcast %cst_10 : f32 to vector<16x1xf32>
    %17 = arith.maximumf %15, %16 : vector<16x1xf32>
    %cst_11 = arith.constant 9.99999974E-6 : f32
    %18 = vector.broadcast %cst_11 : f32 to vector<16x1xf32>
    %19 = arith.addf %17, %18 : vector<16x1xf32>
    %20 = math.rsqrt %19 : vector<16x1xf32>
    %21 = vector.broadcast %8 : vector<16x1xf32> to vector<16x32xf32>
    %22 = arith.subf %4, %21 : vector<16x32xf32>
    %23 = vector.broadcast %20 : vector<16x1xf32> to vector<16x32xf32>
    %24 = arith.mulf %22, %23 : vector<16x32xf32>
    %25 = vector.broadcast %0 : vector<1x32xf32> to vector<16x32xf32>
    %26 = arith.mulf %24, %25 : vector<16x32xf32>
    %27 = vector.broadcast %1 : vector<1x32xf32> to vector<16x32xf32>
    %28 = arith.addf %26, %27 : vector<16x32xf32>
    %c0_12 = arith.constant 0 : index
    %c0_13 = arith.constant 0 : index
    %29 = vector.load %arg5[%c0_12, %c0_13] : memref<16x32xf32, #tpu.memory_space<vmem>>, vector<16x32xf32>
    tpu.vector_store %arg5[%c0_12, %c0_13], %28 {strides = array<i32>} : memref<16x32xf32, #tpu.memory_space<vmem>>, vector<16x32xf32>,
    return
  }
  func.func @transform_0(%arg0: i32) -> (i32, i32) {
    %c0_i32 = arith.constant 0 : i32
    %c0_i32_0 = arith.constant 0 : i32
    return %arg0, %c0_i32 : i32, i32
  }
  func.func @transform_1(%arg0: i32) -> (i32, i32) {
    %c0_i32 = arith.constant 0 : i32
    %c0_i32_0 = arith.constant 0 : i32
    return %arg0, %c0_i32 : i32, i32
  }
  func.func @transform_2(%arg0: i32) -> (i32, i32) {
    %c0_i32 = arith.constant 0 : i32
    %c0_i32_0 = arith.constant 0 : i32
    %c0_i32_1 = arith.constant 0 : i32
    return %c0_i32, %c0_i32_0 : i32, i32
  }
  func.func @transform_3(%arg0: i32) -> (i32, i32) {
    %c0_i32 = arith.constant 0 : i32
    %c0_i32_0 = arith.constant 0 : i32
    %c0_i32_1 = arith.constant 0 : i32
    return %c0_i32, %c0_i32_0 : i32, i32
  }
  func.func @transform_4(%arg0: i32) -> (i32, i32) {
    %c0_i32 = arith.constant 0 : i32
    %c0_i32_0 = arith.constant 0 : i32
    return %arg0, %c0_i32 : i32, i32
  }
}

</mosaic_0001>

<llo_original>
// kernel: tpu_custom_call.1
$region0: #{tpu_custom_call.1}
  #allocation0 [shape = 'u32[]', space=smem, size = 0x4, offset = 0x4, fixed_abs, tag = 'smem constant byte address 0x4 - core index']
  #allocation1 [shape = 'u32[144,128]{1,0:T(1,128)}', space=vmem, size = 0x12000, scoped, tag = 'internal scratch']
  %s0 = inlined_call_operand.hbm [shape: f32[16,32], index: 0, kind: input, shape index: {}]
  %s1 = inlined_call_operand.hbm [shape: f32[16,32], index: 1, kind: input, shape index: {}]
  %s2 = inlined_call_operand.vmem [shape: f32[1,32], index: 2, kind: input, shape index: {}]
  %s3 = inlined_call_operand.vmem [shape: f32[1,32], index: 3, kind: input, shape index: {}]
  %s4 = inlined_call_operand.hbm [shape: f32[16,32], index: 4, kind: output, shape index: {}]
  %s5 = sld [smem:[#allocation0]]
  $region34: #{tpu_custom_call.1} parent=0
    _
  %s7 = ssub.s32 1, %s5
  %s8 = scalar_select 0, %s7, %s5
  $region1: #{tpu_custom_call.1} parent=0
    #allocation2 [shape = 'u8[8192]{0}', space=vmem, size = 0x2000, scoped, tag = 'input window, operand 0, single buffered']
    #allocation3 [shape = 's32[1]{0}', space=sflag, size = 0x4, scoped, tag = 'scoped memory for tpu_custom_call.1']
    #allocation4 [shape = 's32[1]{0}', space=sflag, size = 0x4, scoped, tag = 'scoped memory for tpu_custom_call.1']
    #allocation5 [shape = 'u8[8192]{0}', space=vmem, size = 0x2000, scoped, tag = 'input window, operand 1, single buffered']
    #allocation6 [shape = 's32[1]{0}', space=sflag, size = 0x4, scoped, tag = 'scoped memory for tpu_custom_call.1']
    #allocation7 [shape = 'u8[8192]{0}', space=vmem, size = 0x2000, scoped, tag = 'output window, operand 0, single buffered']
    %9 = vsyncpa [#allocation3], 0
    %10 = vsyncpa [#allocation6], 0
    %11 = vsyncpa [#allocation4], 0
    // Predicated region
    $region2: #{tpu_custom_call.1} parent=1 // pred_check
      _
    $region3: #{tpu_custom_call.1} parent=1 // pred_check_branch
      %13 = sbr.rel (0) target = $region5
    $region4: #{tpu_custom_call.1} parent=1 // pred_region
      %s15 = ssub.s32 256, 256
      %16 = vsyncadd [#allocation3], %s15
      %s17 = sshll.u32 [#allocation2], 4
      %s18 = int_to_ptr.vmem [resolvable:$true] %s17
      %23 = dma.hbm_to_vmem [thread:$0]  %s0, 256, %s18, [#allocation3], 128, 128, 8
    $region5: #{tpu_custom_call.1} parent=1 // pred_fallthru
      _
    // Predicated region
    $region6: #{tpu_custom_call.1} parent=1 // pred_check
      _
    $region7: #{tpu_custom_call.1} parent=1 // pred_check_branch
      %25 = sbr.rel (0) target = $region9
    $region8: #{tpu_custom_call.1} parent=1 // pred_region
      %s27 = ssub.s32 256, 256
      %28 = vsyncadd [#allocation6], %s27
      %s29 = sshll.u32 [#allocation5], 4
      %s30 = int_to_ptr.vmem [resolvable:$true] %s29
      %35 = dma.hbm_to_vmem [thread:$0]  %s1, 256, %s30, [#allocation6], 128, 128, 8
    $region9: #{tpu_custom_call.1} parent=1 // pred_fallthru
      _
    // Predicated region
    $region10: #{tpu_custom_call.1} parent=1 // pred_check
      _
    $region11: #{tpu_custom_call.1} parent=1 // pred_check_branch
      %37 = sbr.rel (0) target = $region13
    $region12: #{tpu_custom_call.1} parent=1 // pred_region
      _
    $region13: #{tpu_custom_call.1} parent=1 // pred_fallthru
      _
    // Predicated region
    $region14: #{tpu_custom_call.1} parent=1 // pred_check
      _
    $region15: #{tpu_custom_call.1} parent=1 // pred_check_branch
      %39 = sbr.rel (0) target = $region17
    $region16: #{tpu_custom_call.1} parent=1 // pred_region
      _
    $region17: #{tpu_custom_call.1} parent=1 // pred_fallthru
      _
    // Predicated region
    $region18: #{tpu_custom_call.1} parent=1 // pred_check
      _
    $region19: #{tpu_custom_call.1} parent=1 // pred_check_branch
      %41 = sbr.rel (0) target = $region21
    $region20: #{tpu_custom_call.1} parent=1 // pred_region
      %42 = dma.done [#allocation3], 256
    $region21: #{tpu_custom_call.1} parent=1 // pred_fallthru
      _
    // Predicated region
    $region22: #{tpu_custom_call.1} parent=1 // pred_check
      _
    $region23: #{tpu_custom_call.1} parent=1 // pred_check_branch
      %44 = sbr.rel (0) target = $region25
    $region24: #{tpu_custom_call.1} parent=1 // pred_region
      %45 = dma.done [#allocation6], 256
    $region25: #{tpu_custom_call.1} parent=1 // pred_fallthru
      _
    %v46 = vld [vmem:[%s2] sm:$0x1]
    %v47 = vld [vmem:[%s3] sm:$0x1]
    %v48 = vld [vmem:[#allocation2] sm:$0xff]
    %v49 = vld [vmem:[#allocation2 + $0x8] sm:$0xff]
    %v50 = vld [vmem:[#allocation5] sm:$0xff]
    %v51 = vld [vmem:[#allocation5 + $0x8] sm:$0xff]
    %v52 = vadd.f32 %v48, %v50
    %v53 = vadd.f32 %v49, %v51
    %vm54 = vcmask 261120
    %v55 = vsel %vm54, %v52, 0.0
    %56 = vadd.xlane.f32.xlu0 %v55
    %v57 = vpop.xlane.xlu0 %56
    %v58 = vsel %vm54, %v53, 0.0
    %59 = vadd.xlane.f32.xlu0 %v58
    %v60 = vpop.xlane.xlu0 %59
    %v61 = vrcp.pop 32.0
    %v62 = vmul.f32 %v57, %v61
    %v63 = vmul.f32 %v60, %v61
    %v64 = vmul.f32 %v52, %v52
    %v65 = vmul.f32 %v53, %v53
    %v66 = vsel %vm54, %v64, 0.0
    %67 = vadd.xlane.f32.xlu0 %v66
    %v68 = vpop.xlane.xlu0 %67
    %v69 = vsel %vm54, %v65, 0.0
    %70 = vadd.xlane.f32.xlu0 %v69
    %v71 = vpop.xlane.xlu0 %70
    %v72 = vmul.f32 %v68, %v61
    %v73 = vmul.f32 %v71, %v61
    %v74 = vmul.f32 %v62, %v62
    %v75 = vmul.f32 %v63, %v63
    %v76 = vsub.f32 %v72, %v74
    %v77 = vsub.f32 %v73, %v75
    %v78 = vmax.f32 %v76, 0.0
    %v79 = vmax.f32 %v77, 0.0
    %v80 = vadd.f32 %v78, 1e-05
    %v81 = vadd.f32 %v79, 1e-05
    %v82 = vrsqrt.pop %v80
    %v83 = vrsqrt.pop %v81
    %v84 = vsub.f32 %v52, %v62
    %v85 = vsub.f32 %v53, %v63
    %v86 = vmul.f32 %v84, %v82
    %v87 = vmul.f32 %v85, %v83
    %v89 = vlaneseq
    %v90 = vshrl.u32 %v89, 7
    %v91 = vsub.s32 0, %v90
    %v92 = vrot.slane %v46, %v91
    %v94 = vmul.f32 %v86, %v92
    %v95 = vmul.f32 %v87, %v92
    %v97 = vlaneseq
    %v98 = vshrl.u32 %v97, 7
    %v99 = vsub.s32 0, %v98
    %v100 = vrot.slane %v47, %v99
    %v102 = vadd.f32 %v94, %v100
    %v103 = vadd.f32 %v95, %v100
    %104 = vst.msk [vmem:[#allocation7] sm:$0xff] %vm54, %v102
    %105 = vst.msk [vmem:[#allocation7 + $0x8] sm:$0xff] %vm54, %v103
    // Predicated region
    $region26: #{tpu_custom_call.1} parent=1 // pred_check
      _
    $region27: #{tpu_custom_call.1} parent=1 // pred_check_branch
      %107 = sbr.rel (0) target = $region29
    $region28: #{tpu_custom_call.1} parent=1 // pred_region
      %s109 = ssub.s32 256, 256
      %110 = vsyncadd [#allocation4], %s109
      %s111 = sshll.u32 [#allocation7], 4
      %s112 = int_to_ptr.vmem [resolvable:$true] %s111
      %117 = dma.vmem_to_hbm [thread:$0]  %s112, 256, %s4, [#allocation4], 128, 128, 8
    $region29: #{tpu_custom_call.1} parent=1 // pred_fallthru
      _
    // Predicated region
    $region30: #{tpu_custom_call.1} parent=1 // pred_check
      _
    $region31: #{tpu_custom_call.1} parent=1 // pred_check_branch
      %119 = sbr.rel (0) target = $region33
    $region32: #{tpu_custom_call.1} parent=1 // pred_region
      %120 = dma.done [#allocation4], 256
    $region33: #{tpu_custom_call.1} parent=1 // pred_fallthru
      _
    %121 = vsyncpa [#allocation3], 1
    %122 = vsyncpa [#allocation6], 1
    %123 = vsyncpa [#allocation4], 1

</llo_original>
